<compile_context>
chip_gen: v7x
topology: tpu7x:2x2x1
jax: 0.10.0
libtpu: 0.0.40
codegen_flags: <defaults>
</compile_context>

<pallas_src>
import jax
import jax.numpy as jnp
from jax.experimental import pallas as pl
from jax.experimental.pallas import tpu as pltpu


def _copy_kernel(x_ref, o_ref):
    # Identity copy of the current (tile_m, N) block.
    o_ref[...] = x_ref[...]


def _pick_slab(total: int) -> tuple[int, int]:
    """Factor `total` elements into a lane/sublane-dense (M, N) slab:
    N a large multiple of 128 (lane axis), M a multiple of 8 (sublane axis).
    Returns (0, 0) if no such factorization exists."""
    for n in (4096, 2048, 1024, 512, 256, 128):
        if total % n == 0 and (total // n) % 8 == 0:
            return total // n, n
    return 0, 0


def _pick_tile_m(m: int, n: int, itemsize: int,
                 max_block_bytes: int = 2 << 20) -> int:
    """Largest multiple-of-8 divisor of m whose (tile_m, n) block stays under
    `max_block_bytes`; prefers >= 2 grid steps when possible."""
    row_bytes = n * itemsize
    cap = max(8, min(m, (max_block_bytes // row_bytes) // 8 * 8))
    best = 8
    tm = cap
    while tm >= 8:
        if m % tm == 0:
            best = tm
            break
        tm -= 8
    # Prefer at least 2 grid iterations so the "parallel" grid axis can be
    # sharded across TensorCores (v7x) and the DMA pipeline has work to hide.
    if best == m and m % 16 == 0:
        best = m // 2
    return best


@jax.jit
def flatten_pallas(x: jax.Array) -> jax.Array:
    """Equivalent of torch `x.view(x.size(0), -1)` for a contiguous input."""
    b = x.shape[0]
    d = 1
    for s in x.shape[1:]:
        d *= s
    total = b * d
    itemsize = jnp.dtype(x.dtype).itemsize

    m, n = _pick_slab(total)
    if m == 0:
        # No (8k, 128m) factorization: single full block (exact-dims exception).
        m, n = b, d
        tile_m = m
    else:
        tile_m = _pick_tile_m(m, n, itemsize)

    grid = (m // tile_m,)

    # Row-major flatten / re-view: pure metadata, matches torch .view for a
    # contiguous NCHW tensor.
    x_slab = jnp.reshape(x, (m, n))

    out_slab = pl.pallas_call(
        _copy_kernel,
        out_shape=jax.ShapeDtypeStruct((m, n), x.dtype),
        grid_spec=pltpu.PrefetchScalarGridSpec(
            num_scalar_prefetch=0,
            grid=grid,
            in_specs=[pl.BlockSpec((tile_m, n), lambda i: (i, 0))],
            out_specs=pl.BlockSpec((tile_m, n), lambda i: (i, 0)),
        ),
        # Output aliases the input: the identity copy degenerates to (near) a
        # no-op instead of a full redundant HBM round trip.
        input_output_aliases={0: 0},
        compiler_params=pltpu.CompilerParams(
            dimension_semantics=("parallel",),
        ),
    )(x_slab)

    return jnp.reshape(out_slab, (b, d))


if __name__ == "__main__":
    key = jax.random.PRNGKey(0)
    # Small NCHW input consistent with a CNN feature map: B=2, C=4, H=W=16.
    x = jax.random.normal(key, (2, 4, 16, 16), dtype=jnp.float32)

    # Reference semantics: torch x.view(B, -1) == row-major reshape.
    y_ref = jnp.reshape(x, (x.shape[0], -1))

    y = flatten_pallas(x)
    y = jax.block_until_ready(y)

    assert y.shape == (2, 4 * 16 * 16), y.shape
    assert y.dtype == x.dtype
    assert jnp.array_equal(y, y_ref), "Pallas flatten mismatch vs reference"

    print("KERNEL_OK")
</pallas_src>

<mosaic_0001>
module attributes {stable_mosaic.version = 11 : i64} {
  func.func @_copy_kernel(%arg0: i32, %arg1: memref<8x256xf32, #tpu.memory_space<vmem>>, %arg2: memref<8x256xf32, #tpu.memory_space<vmem>>) attributes {dimension_semantics = [#tpu.dimension_semantics<parallel>], iteration_bounds = array<i64: 1>, scalar_prefetch = 0 : i64, scratch_operands = 0 : i64, tpu.core_type = #tpu.core_type<tc>, window_params = [{transform_indices = @transform_0, window_bounds = array<i64: 8, 256>}, {transform_indices = @transform_1, window_bounds = array<i64: 8, 256>}]} {
    %c0 = arith.constant 0 : index
    %c0_0 = arith.constant 0 : index
    %0 = vector.load %arg1[%c0, %c0_0] : memref<8x256xf32, #tpu.memory_space<vmem>>, vector<8x256xf32>
    %c0_1 = arith.constant 0 : index
    %c0_2 = arith.constant 0 : index
    %1 = vector.load %arg2[%c0_1, %c0_2] : memref<8x256xf32, #tpu.memory_space<vmem>>, vector<8x256xf32>
    tpu.vector_store %arg2[%c0_1, %c0_2], %0 {strides = array<i32>} : memref<8x256xf32, #tpu.memory_space<vmem>>, vector<8x256xf32>,
    return
  }
  func.func @transform_0(%arg0: i32) -> (i32, i32) {
    %c0_i32 = arith.constant 0 : i32
    %c0_i32_0 = arith.constant 0 : i32
    return %arg0, %c0_i32 : i32, i32
  }
  func.func @transform_1(%arg0: i32) -> (i32, i32) {
    %c0_i32 = arith.constant 0 : i32
    %c0_i32_0 = arith.constant 0 : i32
    return %arg0, %c0_i32 : i32, i32
  }
}

</mosaic_0001>

<llo_original>
// kernel: flatten_pallas.1
$region0: #{flatten_pallas.1}
  #allocation0 [shape = 'u32[]', space=smem, size = 0x4, offset = 0x4, fixed_abs, tag = 'smem constant byte address 0x4 - core index']
  #allocation1 [shape = 'u32[144,128]{1,0:T(1,128)}', space=vmem, size = 0x12000, scoped, tag = 'internal scratch']
  %s0 = inlined_call_operand.vmem [shape: f32[8,256], index: 0, kind: input, shape index: {}, may-alias: {0,1}]
  %s1 = inlined_call_operand.vmem [shape: f32[8,256], index: 1, kind: output, shape index: {}, may-alias: {0,1}]
  %s2 = sld [smem:[#allocation0]]
  $region14: #{flatten_pallas.1} parent=0
    _
  %s4 = ssub.s32 1, %s2
  %s5 = scalar_select 0, %s4, %s2
  // Predicated region
  $region2: #{flatten_pallas.1} parent=0 // pred_check
    _
  $region3: #{flatten_pallas.1} parent=0 // pred_check_branch
    %7 = sbr.rel (0) target = $region5
  $region4: #{flatten_pallas.1} parent=0 // pred_region
    _
  $region5: #{flatten_pallas.1} parent=0 // pred_fallthru
    _
  %v8 = vld [vmem:[%s0] sm:$0xff]
  %v9 = vld [vmem:[%s0 + $0x8] sm:$0xff]
  %10 = vst [vmem:[%s1] sm:$0xff] %v8
  %11 = vst [vmem:[%s1 + $0x8] sm:$0xff] %v9
  // Predicated region
  $region6: #{flatten_pallas.1} parent=0 // pred_check
    _
  $region7: #{flatten_pallas.1} parent=0 // pred_check_branch
    %13 = sbr.rel (0) target = $region9
  $region8: #{flatten_pallas.1} parent=0 // pred_region
    _
  $region9: #{flatten_pallas.1} parent=0 // pred_fallthru
    _
  // Predicated region
  $region10: #{flatten_pallas.1} parent=0 // pred_check
    _
  $region11: #{flatten_pallas.1} parent=0 // pred_check_branch
    %15 = sbr.rel (0) target = $region13
  $region12: #{flatten_pallas.1} parent=0 // pred_region
    _
  $region13: #{flatten_pallas.1} parent=0 // pred_fallthru
    _

</llo_original>
